<compile_context>
chip_gen: v7x
topology: tpu7x:2x2x1
jax: 0.10.0
libtpu: 0.0.40
codegen_flags: <defaults>
</compile_context>

<pallas_src>
import functools

import jax
import jax.numpy as jnp
from jax import lax
from jax.experimental import pallas as pl
from jax.experimental.pallas import tpu as pltpu

LN_EPS = 1e-5  # PyTorch nn.LayerNorm default


def _round_up(x, m):
    return (x + m - 1) // m * m


def _layernorm_f32(x_f32, g, b, d_true):
    """Exact LayerNorm over the first d_true lanes of a zero-padded f32 tile."""
    d_pad = x_f32.shape[-1]
    inv_d = jnp.float32(1.0 / d_true)
    mean = jnp.sum(x_f32, axis=-1, keepdims=True) * inv_d   # padded lanes are 0
    centered = x_f32 - mean
    if d_pad != d_true:
        # zero padded lanes so the variance and the matmuls stay exact
        lane = lax.broadcasted_iota(jnp.int32, x_f32.shape, 1)
        centered = jnp.where(lane < d_true, centered, 0.0)
    var = jnp.sum(centered * centered, axis=-1, keepdims=True) * inv_d
    xn = centered * lax.rsqrt(var + LN_EPS)
    return xn * g + b            # padded gamma/beta are 0 -> padded lanes stay 0


def _ffn_resident_kernel(x_ref, g_ref, b_ref, w1_ref, b1_ref, w2_ref, b2_ref,
                         o_ref, *, d_true):
    """Resident-weight path. Grid = (token tiles,).

    W1^T / W2^T use constant index_maps, so they are DMA'd once and stay in
    VMEM; each step does LN -> matmul -> ReLU -> matmul -> bias -> store.
    """
    xn = _layernorm_f32(x_ref[...].astype(jnp.float32), g_ref[...], b_ref[...],
                        d_true).astype(w1_ref.dtype)
    h = jnp.dot(xn, w1_ref[...], preferred_element_type=jnp.float32) + b1_ref[...]
    h = jnp.maximum(h, 0.0)
    # Dropout(p=0.0) is the identity.
    # TODO(synk): training-mode dropout (p > 0) would use pltpu.prng_random_bits.
    out = jnp.dot(h.astype(w2_ref.dtype), w2_ref[...],
                  preferred_element_type=jnp.float32) + b2_ref[...]
    o_ref[...] = out.astype(o_ref.dtype)


def _ffn_stream_kernel(x_ref, g_ref, b_ref, w1_ref, b1_ref, w2_ref, b2_ref,
                       o_ref, xn_ref, acc_ref, *, d_true):
    """Streaming path. Grid = (token tiles, hidden slices); hidden = reduction.

    x_ref : (tm, D_pad) token tile            (constant over the h axis)
    w1_ref: (D_pad, th) slice of W1^T         b1_ref: (1, th)
    w2_ref: (th, D_pad) slice of W2^T         b2_ref: (1, D_pad)
    xn_ref: (tm, D_pad) cached LayerNorm output (matmul operand dtype)
    acc_ref: (tm, D_pad) f32 output accumulator
    """
    h_idx = pl.program_id(1)

    # --- first hidden slice: LayerNorm once per token tile ---
    @pl.when(h_idx == 0)
    def _():
        xn = _layernorm_f32(x_ref[...].astype(jnp.float32), g_ref[...],
                            b_ref[...], d_true)
        xn_ref[...] = xn.astype(xn_ref.dtype)

    # --- Linear(dim -> hidden slice) + ReLU, then Linear(hidden slice -> dim) ---
    h = jnp.dot(xn_ref[...], w1_ref[...],
                preferred_element_type=jnp.float32) + b1_ref[...]
    h = jnp.maximum(h, 0.0)
    # Dropout(p=0.0) is the identity.
    part = jnp.dot(h.astype(w2_ref.dtype), w2_ref[...],
                   preferred_element_type=jnp.float32)

    # assign on the first slice (no zero-fill + RMW), accumulate afterwards
    @pl.when(h_idx == 0)
    def _():
        acc_ref[...] = part

    @pl.when(h_idx != 0)
    def _():
        acc_ref[...] += part

    # --- last hidden slice: add second bias, write the tile out ---
    @pl.when(h_idx == pl.num_programs(1) - 1)
    def _():
        o_ref[...] = (acc_ref[...] + b2_ref[...]).astype(o_ref.dtype)


def prepare_ffn_params(gamma, beta, w1, b1, w2, b2, *, d_pad, h_pad, mm_dtype):
    """One-time parameter prep (PyTorch layout -> padded kernel layout).

    Do this once per model (outside the hot loop): transposes the weights,
    zero-pads D/H up to lane-dense multiples of 128, and casts the weights to
    the matmul operand dtype (bf16 on v6e/v7x models when tolerable).
    """
    H, D = w1.shape

    def pad2(a, rows, cols):
        return jnp.pad(a, ((0, rows - a.shape[0]), (0, cols - a.shape[1])))

    w1t = pad2(jnp.transpose(w1).astype(mm_dtype), d_pad, h_pad)   # (D_pad, H_pad)
    w2t = pad2(jnp.transpose(w2).astype(mm_dtype), h_pad, d_pad)   # (H_pad, D_pad)
    g2 = pad2(gamma.reshape(1, D).astype(jnp.float32), 1, d_pad)
    be2 = pad2(beta.reshape(1, D).astype(jnp.float32), 1, d_pad)
    b1r = pad2(b1.reshape(1, H).astype(jnp.float32), 1, h_pad)
    b2r = pad2(b2.reshape(1, D).astype(jnp.float32), 1, d_pad)
    return w1t, b1r, w2t, b2r, g2, be2


def feedforward_pallas(x, gamma, beta, w1, b1, w2, b2, *,
                       tm=None, th=None, matmul_dtype=None,
                       vmem_budget_bytes=None, vmem_limit_bytes=None):
    """x: (B, N, dim). w1: (hidden, dim), w2: (dim, hidden) in PyTorch layout.

    tm / th: optional explicit token-row / hidden tiles; by default they are
    auto-selected (resident-weight path when the weights fit VMEM, otherwise a
    streamed hidden reduction with MXU-aligned tiles).
    matmul_dtype: MXU operand dtype; defaults to bf16 iff x is bf16, else f32.
    vmem_budget_bytes: override the tile-selection VMEM budget (testing knob).
    """
    B, N, D = x.shape
    H = w1.shape[0]
    T = B * N

    if matmul_dtype is None:
        matmul_dtype = jnp.bfloat16 if x.dtype == jnp.bfloat16 else jnp.float32
    mm_dtype = jnp.dtype(matmul_dtype)
    xb = jnp.dtype(x.dtype).itemsize
    wb = mm_dtype.itemsize

    d_pad = _round_up(D, 128)
    h_pad = _round_up(H, 128)

    # ---- generation-aware VMEM budget (v5e/v6e ~105 MiB, v7x ~52 MiB) ----
    try:
        vmem_cap = int(pltpu.get_tpu_info().vmem_capacity_bytes)
    except Exception:  # query unavailable -> assume the smallest (v7x) VMEM
        vmem_cap = 64 << 20
    hard_cap = max(min(int(vmem_cap * 0.82), vmem_cap - (8 << 20)), 16 << 20)
    budget = hard_cap if vmem_budget_bytes is None else int(vmem_budget_bytes)

    # ---- token-row tile candidates (MXU-aligned, megacore-aware) ----
    row_align = 8 if xb >= 4 else 16          # sublane packing of the I/O dtype

    def align_rows(t):
        t = max(row_align, int(t))
        if t >= 256:
            return _round_up(t, 256)          # MXU-native on v6e/v7x
        if t > 64:
            return _round_up(t, 128)
        return _round_up(t, row_align)

    t_cap = align_rows(T)
    if T >= 1024:
        # keep >= 2 token tiles so the "parallel" axis feeds both v7x TensorCores
        t_cap = min(t_cap, align_rows(-(-T // 2)))
    if tm is not None:
        tm_cands = [min(align_rows(tm), t_cap)]
    else:
        target = 1024 if wb == 2 else 512     # above the HBM/MXU balance point
        tm_cands = [min(align_rows(c), t_cap) for c in (target, 768, 512, 256, 128)]
        tm_cands = list(dict.fromkeys(tm_cands))

    # ---- hidden-dim tile candidates: exact divisors of h_pad (no waste) ----
    units = h_pad // 128
    divisors = [128 * d for d in range(1, units + 1) if units % d == 0]
    div256 = sorted([t for t in divisors if t % 256 == 0], reverse=True)
    div128 = sorted([t for t in divisors if t % 256 != 0], reverse=True)
    th_auto = div256 + div128                 # prefer MXU-native 256-multiples

    # ---- VMEM footprint estimates (pipeline buffers + scratch + body temps) ----
    bias_bytes = 4 * (3 * d_pad + h_pad) * 4

    def est_resident(tmc):
        return (4 * tmc * d_pad * xb          # x + out tiles (double-buffered)
                + 4 * d_pad * h_pad * wb      # W1^T + W2^T (2 buffers each)
                + tmc * d_pad * (8 + wb)      # LN f32 temp + xn cast + f32 out
                + tmc * h_pad * (4 + wb)      # ReLU intermediate (f32 + cast)
                + bias_bytes)

    def est_stream(tmc, thc):
        return (4 * tmc * d_pad * xb          # x + out tiles (double-buffered)
                + 4 * d_pad * thc * wb        # W1^T + W2^T slices (2 bufs each)
                + tmc * d_pad * (wb + 4)      # xn scratch + f32 accumulator
                + tmc * d_pad * 8             # LN f32 temp + partial f32
                + tmc * thc * (4 + wb)        # ReLU intermediate (f32 + cast)
                + bias_bytes)

    # ---- choose resident (weights stay in VMEM) vs streaming path ----
    mode, tm_sel, th_sel, est = None, None, None, None
    th_user = None if th is None else min(_round_up(max(int(th), 128), 128), h_pad)
    if th_user is None or th_user == h_pad:
        for tmc in tm_cands:
            e = est_resident(tmc)
            if e <= budget:
                mode, tm_sel, th_sel, est = "resident", tmc, h_pad, e
                break
    if mode is None:
        if th_user is not None:
            th_list = [th_user]
        else:
            th_list = [t for t in th_auto if t < h_pad] or [h_pad]
        for tmc in tm_cands:
            for thc in th_list:
                e = est_stream(tmc, thc)
                if e <= budget:
                    mode, tm_sel, th_sel, est = "stream", tmc, thc, e
                    break
            if mode is not None:
                break
        if mode is None:                      # nothing fits: smallest tiles anyway
            tm_sel, th_sel = tm_cands[-1], min(th_list)
            mode, est = "stream", est_stream(tm_sel, th_sel)
        if h_pad % th_sel != 0:               # user th that does not divide h_pad
            h_pad = _round_up(h_pad, th_sel)

    t_pad = _round_up(T, tm_sel)
    n_i = t_pad // tm_sel

    # one-time parameter prep (hoist out of the hot loop in real use)
    w1t, b1r, w2t, b2r, g2, be2 = prepare_ffn_params(
        gamma, beta, w1, b1, w2, b2, d_pad=d_pad, h_pad=h_pad, mm_dtype=mm_dtype)

    x2 = x.reshape(T, D)
    if (t_pad, d_pad) != (T, D):
        x2 = jnp.pad(x2, ((0, t_pad - T), (0, d_pad - D)))

    if vmem_limit_bytes is None:
        vmem_limit_bytes = min(hard_cap, max(int(est * 1.25) + (2 << 20), 16 << 20))

    if mode == "resident":
        kernel = functools.partial(_ffn_resident_kernel, d_true=D)
        grid_spec = pltpu.PrefetchScalarGridSpec(
            num_scalar_prefetch=0,
            grid=(n_i,),
            in_specs=[
                pl.BlockSpec((tm_sel, d_pad), lambda i: (i, 0)),   # x tile
                pl.BlockSpec((1, d_pad), lambda i: (0, 0)),        # gamma
                pl.BlockSpec((1, d_pad), lambda i: (0, 0)),        # beta
                pl.BlockSpec((d_pad, h_pad), lambda i: (0, 0)),    # W1^T (resident)
                pl.BlockSpec((1, h_pad), lambda i: (0, 0)),        # b1
                pl.BlockSpec((h_pad, d_pad), lambda i: (0, 0)),    # W2^T (resident)
                pl.BlockSpec((1, d_pad), lambda i: (0, 0)),        # b2
            ],
            out_specs=pl.BlockSpec((tm_sel, d_pad), lambda i: (i, 0)),
            scratch_shapes=[],
        )
        dims = ("parallel",)
    else:
        n_h = h_pad // th_sel
        kernel = functools.partial(_ffn_stream_kernel, d_true=D)
        grid_spec = pltpu.PrefetchScalarGridSpec(
            num_scalar_prefetch=0,
            grid=(n_i, n_h),
            in_specs=[
                pl.BlockSpec((tm_sel, d_pad), lambda i, h: (i, 0)),   # x tile
                pl.BlockSpec((1, d_pad), lambda i, h: (0, 0)),        # gamma
                pl.BlockSpec((1, d_pad), lambda i, h: (0, 0)),        # beta
                pl.BlockSpec((d_pad, th_sel), lambda i, h: (0, h)),   # W1^T slice
                pl.BlockSpec((1, th_sel), lambda i, h: (0, h)),       # b1 slice
                pl.BlockSpec((th_sel, d_pad), lambda i, h: (h, 0)),   # W2^T slice
                pl.BlockSpec((1, d_pad), lambda i, h: (0, 0)),        # b2
            ],
            out_specs=pl.BlockSpec((tm_sel, d_pad), lambda i, h: (i, 0)),
            scratch_shapes=[
                pltpu.VMEM((tm_sel, d_pad), mm_dtype),     # cached LayerNorm output
                pltpu.VMEM((tm_sel, d_pad), jnp.float32),  # f32 output accumulator
            ],
        )
        dims = ("parallel", "arbitrary")

    out = pl.pallas_call(
        kernel,
        out_shape=jax.ShapeDtypeStruct((t_pad, d_pad), x.dtype),
        grid_spec=grid_spec,
        compiler_params=pltpu.CompilerParams(
            dimension_semantics=dims,
            vmem_limit_bytes=int(vmem_limit_bytes),
        ),
    )(x2, g2, be2, w1t, b1r, w2t, b2r)

    return out[:T, :D].reshape(B, N, D)


def feedforward_ref(x, gamma, beta, w1, b1, w2, b2):
    xf = x.astype(jnp.float32)
    mean = jnp.mean(xf, axis=-1, keepdims=True)
    var = jnp.mean((xf - mean) ** 2, axis=-1, keepdims=True)
    xn = (xf - mean) / jnp.sqrt(var + LN_EPS) * gamma + beta
    h = jnp.maximum(xn @ w1.T.astype(jnp.float32) + b1, 0.0)
    return (h @ w2.T.astype(jnp.float32) + b2).astype(x.dtype)


def _make_params(key, dim, hidden, dtype=jnp.float32):
    kg, kb, kw1, kb1, kw2, kb2 = jax.random.split(key, 6)
    gamma = jnp.ones((dim,), jnp.float32) + 0.01 * jax.random.normal(kg, (dim,))
    beta = 0.01 * jax.random.normal(kb, (dim,))
    w1 = (jax.random.normal(kw1, (hidden, dim), jnp.float32) / dim ** 0.5).astype(dtype)
    b1 = 0.01 * jax.random.normal(kb1, (hidden,), jnp.float32)
    w2 = (jax.random.normal(kw2, (dim, hidden), jnp.float32) / hidden ** 0.5).astype(dtype)
    b2 = 0.01 * jax.random.normal(kb2, (dim,), jnp.float32)
    return gamma, beta, w1, b1, w2, b2


if __name__ == "__main__":
    key = jax.random.PRNGKey(0)
    k1, k2, k3, k4, k5, k6 = jax.random.split(key, 6)

    # --- check 1: small demo shapes, f32, auto tiles -> resident-weight path ---
    B, N, DIM, HIDDEN = 2, 8, 32, 64
    x = jax.random.normal(k1, (B, N, DIM), dtype=jnp.float32)
    params = _make_params(k2, DIM, HIDDEN)
    out = jax.block_until_ready(feedforward_pallas(x, *params))
    ref = feedforward_ref(x, *params)
    assert out.shape == (B, N, DIM)
    assert jnp.allclose(out, ref, atol=1e-4, rtol=1e-4), "mismatch (resident demo)"

    # --- check 2: ragged tokens + explicit hidden tiling -> streaming path ---
    B2, N2, D2, H2 = 2, 50, 96, 320   # T=100 not divisible by tm, H needs 3 slices
    x2 = jax.random.normal(k3, (B2, N2, D2), dtype=jnp.float32)
    params2 = _make_params(k4, D2, H2)
    out2 = jax.block_until_ready(feedforward_pallas(x2, *params2, tm=64, th=128))
    ref2 = feedforward_ref(x2, *params2)
    assert out2.shape == (B2, N2, D2)
    assert jnp.allclose(out2, ref2, atol=1e-4, rtol=1e-4), "mismatch (stream explicit)"

    # --- check 3: bf16 model (bf16 MXU operands, f32 LN stats / accumulation) ---
    B3, N3, D3, H3 = 2, 16, 128, 256
    x3 = jax.random.normal(k5, (B3, N3, D3), dtype=jnp.float32).astype(jnp.bfloat16)
    params3 = _make_params(jax.random.PRNGKey(1), D3, H3)
    out3 = jax.block_until_ready(feedforward_pallas(x3, *params3))
    ref3 = feedforward_ref(x3, *params3)
    assert out3.shape == (B3, N3, D3)
    assert jnp.allclose(out3.astype(jnp.float32), ref3.astype(jnp.float32),
                        atol=1e-1, rtol=1e-1), "mismatch (bf16 path)"

    # --- check 4: moderate T, auto tiles (>= 2 token tiles, resident weights) ---
    B4, N4, D4, H4 = 4, 256, 256, 1024
    x4 = jax.random.normal(k6, (B4, N4, D4), dtype=jnp.float32)
    params4 = _make_params(jax.random.PRNGKey(2), D4, H4)
    out4 = jax.block_until_ready(feedforward_pallas(x4, *params4))
    ref4 = feedforward_ref(x4, *params4)
    assert out4.shape == (B4, N4, D4)
    assert jnp.allclose(out4, ref4, atol=1e-3, rtol=1e-3), "mismatch (auto resident)"

    # --- check 5: tiny forced budget -> auto divisor-based streaming selection ---
    out5 = jax.block_until_ready(
        feedforward_pallas(x2, *params2, vmem_budget_bytes=1_200_000))
    assert jnp.allclose(out5, ref2, atol=1e-4, rtol=1e-4), "mismatch (auto stream)"

    print("KERNEL_OK")
</pallas_src>

<mosaic_0001>
module attributes {stable_mosaic.version = 11 : i64} {
  func.func @_ffn_resident_kernel(%arg0: i32, %arg1: memref<16x128xf32, #tpu.memory_space<vmem>>, %arg2: memref<1x128xf32, #tpu.memory_space<vmem>>, %arg3: memref<1x128xf32, #tpu.memory_space<vmem>>, %arg4: memref<128x128xf32, #tpu.memory_space<vmem>>, %arg5: memref<1x128xf32, #tpu.memory_space<vmem>>, %arg6: memref<128x128xf32, #tpu.memory_space<vmem>>, %arg7: memref<1x128xf32, #tpu.memory_space<vmem>>, %arg8: memref<16x128xf32, #tpu.memory_space<vmem>>) attributes {dimension_semantics = [#tpu.dimension_semantics<parallel>], iteration_bounds = array<i64: 1>, scalar_prefetch = 0 : i64, scratch_operands = 0 : i64, tpu.core_type = #tpu.core_type<tc>, window_params = [{transform_indices = @transform_0, window_bounds = array<i64: 16, 128>}, {pipeline_mode = #tpu.pipeline_mode<synchronous>, transform_indices = @transform_1, window_bounds = array<i64: 1, 128>}, {pipeline_mode = #tpu.pipeline_mode<synchronous>, transform_indices = @transform_2, window_bounds = array<i64: 1, 128>}, {pipeline_mode = #tpu.pipeline_mode<synchronous>, transform_indices = @transform_3, window_bounds = array<i64: 128, 128>}, {pipeline_mode = #tpu.pipeline_mode<synchronous>, transform_indices = @transform_4, window_bounds = array<i64: 1, 128>}, {pipeline_mode = #tpu.pipeline_mode<synchronous>, transform_indices = @transform_5, window_bounds = array<i64: 128, 128>}, {pipeline_mode = #tpu.pipeline_mode<synchronous>, transform_indices = @transform_6, window_bounds = array<i64: 1, 128>}, {transform_indices = @transform_7, window_bounds = array<i64: 16, 128>}]} {
    %c0 = arith.constant 0 : index
    %c0_0 = arith.constant 0 : index
    %0 = vector.load %arg1[%c0, %c0_0] : memref<16x128xf32, #tpu.memory_space<vmem>>, vector<16x128xf32>
    %c0_1 = arith.constant 0 : index
    %c0_2 = arith.constant 0 : index
    %1 = vector.load %arg2[%c0_1, %c0_2] : memref<1x128xf32, #tpu.memory_space<vmem>>, vector<1x128xf32>
    %c0_3 = arith.constant 0 : index
    %c0_4 = arith.constant 0 : index
    %2 = vector.load %arg3[%c0_3, %c0_4] : memref<1x128xf32, #tpu.memory_space<vmem>>, vector<1x128xf32>
    %cst = arith.constant dense<0.000000e+00> : vector<16xf32>
    %3 = vector.multi_reduction <add>, %0, %cst [1] : vector<16x128xf32> to vector<16xf32>
    %4 = vector.shape_cast %3 : vector<16xf32> to vector<16x1xf32>
    %cst_5 = arith.constant 3.125000e-02 : f32
    %5 = vector.broadcast %cst_5 : f32 to vector<16x1xf32>
    %6 = arith.mulf %4, %5 : vector<16x1xf32>
    %7 = vector.broadcast %6 : vector<16x1xf32> to vector<16x128xf32>
    %8 = arith.subf %0, %7 : vector<16x128xf32>
    %9 = tpu.iota {dimensions = array<i32: 1>} : vector<16x128xi32>
    %c32_i32 = arith.constant 32 : i32
    %10 = vector.broadcast %c32_i32 : i32 to vector<16x128xi32>
    %11 = arith.cmpi slt, %9, %10 : vector<16x128xi32>
    %cst_6 = arith.constant 0.000000e+00 : f32
    %12 = vector.broadcast %cst_6 : f32 to vector<16x128xf32>
    %13 = arith.select %11, %8, %12 : vector<16x128xi1>, vector<16x128xf32>
    %14 = arith.mulf %13, %13 : vector<16x128xf32>
    %cst_7 = arith.constant dense<0.000000e+00> : vector<16xf32>
    %15 = vector.multi_reduction <add>, %14, %cst_7 [1] : vector<16x128xf32> to vector<16xf32>
    %16 = vector.shape_cast %15 : vector<16xf32> to vector<16x1xf32>
    %cst_8 = arith.constant 3.125000e-02 : f32
    %17 = vector.broadcast %cst_8 : f32 to vector<16x1xf32>
    %18 = arith.mulf %16, %17 : vector<16x1xf32>
    %cst_9 = arith.constant 9.99999974E-6 : f32
    %19 = vector.broadcast %cst_9 : f32 to vector<16x1xf32>
    %20 = arith.addf %18, %19 : vector<16x1xf32>
    %21 = math.rsqrt %20 : vector<16x1xf32>
    %22 = vector.broadcast %21 : vector<16x1xf32> to vector<16x128xf32>
    %23 = arith.mulf %13, %22 : vector<16x128xf32>
    %24 = vector.broadcast %1 : vector<1x128xf32> to vector<16x128xf32>
    %25 = arith.mulf %23, %24 : vector<16x128xf32>
    %26 = vector.broadcast %2 : vector<1x128xf32> to vector<16x128xf32>
    %27 = arith.addf %25, %26 : vector<16x128xf32>
    %c0_10 = arith.constant 0 : index
    %c0_11 = arith.constant 0 : index
    %28 = vector.load %arg4[%c0_10, %c0_11] : memref<128x128xf32, #tpu.memory_space<vmem>>, vector<128x128xf32>
    %cst_12 = arith.constant dense<0.000000e+00> : vector<16x128xf32>
    %29 = tpu.matmul %27, %28, %cst_12 {dimension_numbers = #tpu.dot_dimension_numbers<[1], [0], [0], [1], [0, 0, 1, 1], [], []>} : vector<16x128xf32>, vector<128x128xf32>, vector<16x128xf32> -> vector<16x128xf32>
    %c0_13 = arith.constant 0 : index
    %c0_14 = arith.constant 0 : index
    %30 = vector.load %arg5[%c0_13, %c0_14] : memref<1x128xf32, #tpu.memory_space<vmem>>, vector<1x128xf32>
    %31 = vector.broadcast %30 : vector<1x128xf32> to vector<16x128xf32>
    %32 = arith.addf %29, %31 : vector<16x128xf32>
    %cst_15 = arith.constant 0.000000e+00 : f32
    %33 = vector.broadcast %cst_15 : f32 to vector<16x128xf32>
    %34 = arith.maximumf %32, %33 : vector<16x128xf32>
    %c0_16 = arith.constant 0 : index
    %c0_17 = arith.constant 0 : index
    %35 = vector.load %arg6[%c0_16, %c0_17] : memref<128x128xf32, #tpu.memory_space<vmem>>, vector<128x128xf32>
    %cst_18 = arith.constant dense<0.000000e+00> : vector<16x128xf32>
    %36 = tpu.matmul %34, %35, %cst_18 {dimension_numbers = #tpu.dot_dimension_numbers<[1], [0], [0], [1], [0, 0, 1, 1], [], []>} : vector<16x128xf32>, vector<128x128xf32>, vector<16x128xf32> -> vector<16x128xf32>
    %c0_19 = arith.constant 0 : index
    %c0_20 = arith.constant 0 : index
    %37 = vector.load %arg7[%c0_19, %c0_20] : memref<1x128xf32, #tpu.memory_space<vmem>>, vector<1x128xf32>
    %38 = vector.broadcast %37 : vector<1x128xf32> to vector<16x128xf32>
    %39 = arith.addf %36, %38 : vector<16x128xf32>
    %c0_21 = arith.constant 0 : index
    %c0_22 = arith.constant 0 : index
    %40 = vector.load %arg8[%c0_21, %c0_22] : memref<16x128xf32, #tpu.memory_space<vmem>>, vector<16x128xf32>
    tpu.vector_store %arg8[%c0_21, %c0_22], %39 {strides = array<i32>} : memref<16x128xf32, #tpu.memory_space<vmem>>, vector<16x128xf32>,
    return
  }
  func.func @transform_0(%arg0: i32) -> (i32, i32) {
    %c0_i32 = arith.constant 0 : i32
    %c0_i32_0 = arith.constant 0 : i32
    return %arg0, %c0_i32 : i32, i32
  }
  func.func @transform_1(%arg0: i32) -> (i32, i32) {
    %c0_i32 = arith.constant 0 : i32
    %c0_i32_0 = arith.constant 0 : i32
    %c0_i32_1 = arith.constant 0 : i32
    return %c0_i32, %c0_i32_0 : i32, i32
  }
  func.func @transform_2(%arg0: i32) -> (i32, i32) {
    %c0_i32 = arith.constant 0 : i32
    %c0_i32_0 = arith.constant 0 : i32
    %c0_i32_1 = arith.constant 0 : i32
    return %c0_i32, %c0_i32_0 : i32, i32
  }
  func.func @transform_3(%arg0: i32) -> (i32, i32) {
    %c0_i32 = arith.constant 0 : i32
    %c0_i32_0 = arith.constant 0 : i32
    %c0_i32_1 = arith.constant 0 : i32
    return %c0_i32, %c0_i32_0 : i32, i32
  }
  func.func @transform_4(%arg0: i32) -> (i32, i32) {
    %c0_i32 = arith.constant 0 : i32
    %c0_i32_0 = arith.constant 0 : i32
    %c0_i32_1 = arith.constant 0 : i32
    return %c0_i32, %c0_i32_0 : i32, i32
  }
  func.func @transform_5(%arg0: i32) -> (i32, i32) {
    %c0_i32 = arith.constant 0 : i32
    %c0_i32_0 = arith.constant 0 : i32
    %c0_i32_1 = arith.constant 0 : i32
    return %c0_i32, %c0_i32_0 : i32, i32
  }
  func.func @transform_6(%arg0: i32) -> (i32, i32) {
    %c0_i32 = arith.constant 0 : i32
    %c0_i32_0 = arith.constant 0 : i32
    %c0_i32_1 = arith.constant 0 : i32
    return %c0_i32, %c0_i32_0 : i32, i32
  }
  func.func @transform_7(%arg0: i32) -> (i32, i32) {
    %c0_i32 = arith.constant 0 : i32
    %c0_i32_0 = arith.constant 0 : i32
    return %arg0, %c0_i32 : i32, i32
  }
}

</mosaic_0001>

<llo_original>
// kernel: tpu_custom_call.1
$region0: #{tpu_custom_call.1}
  #allocation0 [shape = 'u32[]', space=smem, size = 0x4, offset = 0x4, fixed_abs, tag = 'smem constant byte address 0x4 - core index']
  #allocation1 [shape = 'u32[144,128]{1,0:T(1,128)}', space=vmem, size = 0x12000, scoped, tag = 'internal scratch']
  %s0 = inlined_call_operand.hbm [shape: f32[16,128], index: 0, kind: input, shape index: {}]
  %s1 = inlined_call_operand.vmem [shape: f32[1,128], index: 1, kind: input, shape index: {}]
  %s2 = inlined_call_operand.vmem [shape: f32[1,128], index: 2, kind: input, shape index: {}]
  %s3 = inlined_call_operand.hbm [shape: f32[128,128], index: 3, kind: input, shape index: {}]
  %s4 = inlined_call_operand.vmem [shape: f32[1,128], index: 4, kind: input, shape index: {}]
  %s5 = inlined_call_operand.hbm [shape: f32[128,128], index: 5, kind: input, shape index: {}]
  %s6 = inlined_call_operand.vmem [shape: f32[1,128], index: 6, kind: input, shape index: {}]
  %s7 = inlined_call_operand.hbm [shape: f32[16,128], index: 7, kind: output, shape index: {}]
  %s8 = sld [smem:[#allocation0]]
  $region50: #{tpu_custom_call.1} parent=0
    _
  %s10 = ssub.s32 1, %s8
  %s11 = scalar_select 0, %s10, %s8
  $region1: #{tpu_custom_call.1} parent=0
    #allocation2 [shape = 'u8[8192]{0}', space=vmem, size = 0x2000, scoped, tag = 'input window, operand 0, single buffered']
    #allocation3 [shape = 's32[1]{0}', space=sflag, size = 0x4, scoped, tag = 'scoped memory for tpu_custom_call.1']
    #allocation4 [shape = 's32[1]{0}', space=sflag, size = 0x4, scoped, tag = 'scoped memory for tpu_custom_call.1']
    #allocation5 [shape = 'u8[65536]{0}', space=vmem, size = 0x10000, scoped, tag = 'input window, operand 3, single buffered']
    #allocation6 [shape = 's32[1]{0}', space=sflag, size = 0x4, scoped, tag = 'scoped memory for tpu_custom_call.1']
    #allocation7 [shape = 'u8[65536]{0}', space=vmem, size = 0x10000, scoped, tag = 'input window, operand 5, single buffered']
    #allocation8 [shape = 'u8[8192]{0}', space=vmem, size = 0x2000, scoped, tag = 'output window, operand 0, single buffered']
    %12 = vsyncpa [#allocation3], 0
    %13 = vsyncpa [#allocation6], 0
    %14 = vsyncpa [#allocation4], 0
    // Predicated region
    $region2: #{tpu_custom_call.1} parent=1 // pred_check
      _
    $region3: #{tpu_custom_call.1} parent=1 // pred_check_branch
      %16 = sbr.rel (0) target = $region5
    $region4: #{tpu_custom_call.1} parent=1 // pred_region
      %s18 = ssub.s32 256, 256
      %19 = vsyncadd [#allocation3], %s18
      %s20 = sshll.u32 [#allocation2], 4
      %s21 = int_to_ptr.vmem [resolvable:$true] %s20
      %26 = dma.hbm_to_vmem [thread:$0]  %s0, 256, %s21, [#allocation3], 128, 128, 8
    $region5: #{tpu_custom_call.1} parent=1 // pred_fallthru
      _
    // Predicated region
    $region6: #{tpu_custom_call.1} parent=1 // pred_check
      _
    $region7: #{tpu_custom_call.1} parent=1 // pred_check_branch
      %28 = sbr.rel (0) target = $region9
    $region8: #{tpu_custom_call.1} parent=1 // pred_region
      _
    $region9: #{tpu_custom_call.1} parent=1 // pred_fallthru
      _
    // Predicated region
    $region10: #{tpu_custom_call.1} parent=1 // pred_check
      _
    $region11: #{tpu_custom_call.1} parent=1 // pred_check_branch
      %30 = sbr.rel (0) target = $region13
    $region12: #{tpu_custom_call.1} parent=1 // pred_region
      _
    $region13: #{tpu_custom_call.1} parent=1 // pred_fallthru
      _
    // Predicated region
    $region14: #{tpu_custom_call.1} parent=1 // pred_check
      _
    $region15: #{tpu_custom_call.1} parent=1 // pred_check_branch
      %32 = sbr.rel (0) target = $region17
    $region16: #{tpu_custom_call.1} parent=1 // pred_region
      %s34 = ssub.s32 2048, 2048
      %35 = vsyncadd [#allocation6], %s34
      %s36 = sshll.u32 [#allocation5], 4
      %s37 = int_to_ptr.vmem [resolvable:$true] %s36
      %42 = dma.hbm_to_vmem [thread:$0]  %s3, 2048, %s37, [#allocation6], 128, 128, 8
    $region17: #{tpu_custom_call.1} parent=1 // pred_fallthru
      _
    // Predicated region
    $region18: #{tpu_custom_call.1} parent=1 // pred_check
      _
    $region19: #{tpu_custom_call.1} parent=1 // pred_check_branch
      %44 = sbr.rel (0) target = $region21
    $region20: #{tpu_custom_call.1} parent=1 // pred_region
      _
    $region21: #{tpu_custom_call.1} parent=1 // pred_fallthru
      _
    // Predicated region
    $region22: #{tpu_custom_call.1} parent=1 // pred_check
      _
    $region23: #{tpu_custom_call.1} parent=1 // pred_check_branch
      %46 = sbr.rel (0) target = $region25
    $region24: #{tpu_custom_call.1} parent=1 // pred_region
      %s48 = ssub.s32 2048, 2048
      %49 = vsyncadd [#allocation6], %s48
      %s50 = sshll.u32 [#allocation7], 4
      %s51 = int_to_ptr.vmem [resolvable:$true] %s50
      %56 = dma.hbm_to_vmem [thread:$0]  %s5, 2048, %s51, [#allocation6], 128, 128, 8
    $region25: #{tpu_custom_call.1} parent=1 // pred_fallthru
      _
    // Predicated region
    $region26: #{tpu_custom_call.1} parent=1 // pred_check
      _
    $region27: #{tpu_custom_call.1} parent=1 // pred_check_branch
      %58 = sbr.rel (0) target = $region29
    $region28: #{tpu_custom_call.1} parent=1 // pred_region
      _
    $region29: #{tpu_custom_call.1} parent=1 // pred_fallthru
      _
    // Predicated region
    $region30: #{tpu_custom_call.1} parent=1 // pred_check
      _
    $region31: #{tpu_custom_call.1} parent=1 // pred_check_branch
      %60 = sbr.rel (0) target = $region33
    $region32: #{tpu_custom_call.1} parent=1 // pred_region
      %61 = dma.done [#allocation3], 256
    $region33: #{tpu_custom_call.1} parent=1 // pred_fallthru
      _
    // Predicated region
    $region34: #{tpu_custom_call.1} parent=1 // pred_check
      _
    $region35: #{tpu_custom_call.1} parent=1 // pred_check_branch
      %63 = sbr.rel (0) target = $region37
    $region36: #{tpu_custom_call.1} parent=1 // pred_region
      %64 = dma.done [#allocation6], 2048
    $region37: #{tpu_custom_call.1} parent=1 // pred_fallthru
      _
    // Predicated region
    $region38: #{tpu_custom_call.1} parent=1 // pred_check
      _
    $region39: #{tpu_custom_call.1} parent=1 // pred_check_branch
      %66 = sbr.rel (0) target = $region41
    $region40: #{tpu_custom_call.1} parent=1 // pred_region
      %67 = dma.done [#allocation6], 2048
    $region41: #{tpu_custom_call.1} parent=1 // pred_fallthru
      _
    %v68 = vld [vmem:[#allocation2] sm:$0xff]
    %v69 = vld [vmem:[#allocation2 + $0x8] sm:$0xff]
    %v70 = vld [vmem:[%s1] sm:$0x1]
    %v71 = vld [vmem:[%s2] sm:$0x1]
    %72 = vadd.xlane.f32.xlu0 %v68
    %v73 = vpop.xlane.xlu0 %72
    %74 = vadd.xlane.f32.xlu0 %v69
    %v75 = vpop.xlane.xlu0 %74
    %v76 = vmul.f32 %v73, 0.03125
    %v77 = vmul.f32 %v75, 0.03125
    %v78 = vsub.f32 %v68, %v76
    %v79 = vsub.f32 %v69, %v77
    %v80 = vlaneseq
    %v81 = vand.u32 %v80, 127
    %vm82 = vcmp.lt.s32.totalorder %v81, 32
    %v83 = vsel %vm82, %v78, 0.0
    %v84 = vsel %vm82, %v79, 0.0
    %v85 = vmul.f32 %v83, %v83
    %v86 = vmul.f32 %v84, %v84
    %87 = vadd.xlane.f32.xlu0 %v85
    %v88 = vpop.xlane.xlu0 %87
    %89 = vadd.xlane.f32.xlu0 %v86
    %v90 = vpop.xlane.xlu0 %89
    %v91 = vmul.f32 %v88, 0.03125
    %v92 = vmul.f32 %v90, 0.03125
    %v93 = vadd.f32 %v91, 1e-05
    %v94 = vadd.f32 %v92, 1e-05
    %v95 = vrsqrt.pop %v93
    %v96 = vrsqrt.pop %v94
    %v97 = vmul.f32 %v83, %v95
    %v98 = vmul.f32 %v84, %v96
    %v100 = vlaneseq
    %v101 = vshrl.u32 %v100, 7
    %v102 = vsub.s32 0, %v101
    %v103 = vrot.slane %v70, %v102
    %v105 = vmul.f32 %v97, %v103
    %v106 = vmul.f32 %v98, %v103
    %v108 = vlaneseq
    %v109 = vshrl.u32 %v108, 7
    %v110 = vsub.s32 0, %v109
    %v111 = vrot.slane %v71, %v110
    %v113 = vadd.f32 %v105, %v111
    %v114 = vadd.f32 %v106, %v111
    %v115 = vld [vmem:[#allocation5] sm:$0xff]
    %v116 = vld [vmem:[#allocation5 + $0x8] sm:$0xff]
    %v117 = vld [vmem:[#allocation5 + $0x10] sm:$0xff]
    %v118 = vld [vmem:[#allocation5 + $0x18] sm:$0xff]
    %v119 = vld [vmem:[#allocation5 + $0x20] sm:$0xff]
    %v120 = vld [vmem:[#allocation5 + $0x28] sm:$0xff]
    %v121 = vld [vmem:[#allocation5 + $0x30] sm:$0xff]
    %v122 = vld [vmem:[#allocation5 + $0x38] sm:$0xff]
    %v123 = vld [vmem:[#allocation5 + $0x40] sm:$0xff]
    %v124 = vld [vmem:[#allocation5 + $0x48] sm:$0xff]
    %v125 = vld [vmem:[#allocation5 + $0x50] sm:$0xff]
    %v126 = vld [vmem:[#allocation5 + $0x58] sm:$0xff]
    %v127 = vld [vmem:[#allocation5 + $0x60] sm:$0xff]
    %v128 = vld [vmem:[#allocation5 + $0x68] sm:$0xff]
    %v129 = vld [vmem:[#allocation5 + $0x70] sm:$0xff]
    %v130 = vld [vmem:[#allocation5 + $0x78] sm:$0xff]
    %v131 = vld [vmem:[%s4] sm:$0x1]
    %v133 = vlaneseq
    %v134 = vshrl.u32 %v133, 7
    %v135 = vsub.s32 0, %v134
    %v136 = vrot.slane %v131, %v135
    %138 = vmatprep.subr.mxu0 0.0
    %139 = vmatpush1.msra.mxu0 %v115
    %140 = vmatprep.subr.mxu0 0.0
    %141 = vmatpush1.msra.mxu0 %v116
    %142 = vmatprep.subr.mxu0 0.0
    %143 = vmatpush1.msra.mxu0 %v117
    %144 = vmatprep.subr.mxu0 0.0
    %145 = vmatpush1.msra.mxu0 %v118
    %146 = vmatprep.subr.mxu0 0.0
    %147 = vmatpush1.msra.mxu0 %v119
    %148 = vmatprep.subr.mxu0 0.0
    %149 = vmatpush1.msra.mxu0 %v120
    %150 = vmatprep.subr.mxu0 0.0
    %151 = vmatpush1.msra.mxu0 %v121
    %152 = vmatprep.subr.mxu0 0.0
    %153 = vmatpush1.msra.mxu0 %v122
    %154 = vmatprep.subr.mxu0 0.0
    %155 = vmatpush1.msra.mxu0 %v123
    %156 = vmatprep.subr.mxu0 0.0
    %157 = vmatpush1.msra.mxu0 %v124
    %158 = vmatprep.subr.mxu0 0.0
    %159 = vmatpush1.msra.mxu0 %v125
    %160 = vmatprep.subr.mxu0 0.0
    %161 = vmatpush1.msra.mxu0 %v126
    %162 = vmatprep.subr.mxu0 0.0
    %163 = vmatpush1.msra.mxu0 %v127
    %164 = vmatprep.subr.mxu0 0.0
    %165 = vmatpush1.msra.mxu0 %v128
    %166 = vmatprep.subr.mxu0 0.0
    %167 = vmatpush1.msra.mxu0 %v129
    %168 = vmatprep.subr.mxu0 0.0
    %169 = vmatpush1.msra.mxu0 %v130
    %170 = vmatprep.subr.mxu0 0.0
    %171 = vmatpush1.msra.mxu0 0.0
    %172 = vmatprep.subr.mxu0 0.0
    %173 = vmatpush1.msra.mxu0 0.0
    %174 = vmatprep.subr.mxu0 0.0
    %175 = vmatpush1.msra.mxu0 0.0
    %176 = vmatprep.subr.mxu0 0.0
    %177 = vmatpush1.msra.mxu0 0.0
    %178 = vmatprep.subr.mxu0 0.0
    %179 = vmatpush1.msra.mxu0 0.0
    %180 = vmatprep.subr.mxu0 0.0
    %181 = vmatpush1.msra.mxu0 0.0
    %182 = vmatprep.subr.mxu0 0.0
    %183 = vmatpush1.msra.mxu0 0.0
    %184 = vmatprep.subr.mxu0 0.0
    %185 = vmatpush1.msra.mxu0 0.0
    %186 = vmatprep.subr.mxu0 0.0
    %187 = vmatpush1.msra.mxu0 0.0
    %188 = vmatprep.subr.mxu0 0.0
    %189 = vmatpush1.msra.mxu0 0.0
    %190 = vmatprep.subr.mxu0 0.0
    %191 = vmatpush1.msra.mxu0 0.0
    %192 = vmatprep.subr.mxu0 0.0
    %193 = vmatpush1.msra.mxu0 0.0
    %194 = vmatprep.subr.mxu0 0.0
    %195 = vmatpush1.msra.mxu0 0.0
    %196 = vmatprep.subr.mxu0 0.0
    %197 = vmatpush1.msra.mxu0 0.0
    %198 = vmatprep.subr.mxu0 0.0
    %199 = vmatpush1.msra.mxu0 0.0
    %200 = vmatprep.subr.mxu0 0.0
    %201 = vmatpush1.msra.mxu0 0.0
    %202 = vmatprep.mubr.f32.mxu0 0.0
    %203 = vmatmul.mubr.f32.gmra.mrb[0].mxu0 %v113
    %v204 = vpop.f32.mrb[0].mxu0
    %v205 = vadd.f32 %v136, %v204
    %v206 = vpop.f32.mrb[0].mxu0
    %207 = vmatprep.mubr.f32.mxu0 0.0
    %208 = vmatmul.mubr.f32.gmra.mrb[0].mxu0 %v114
    %v209 = vpop.f32.mrb[0].mxu0
    %v210 = vadd.f32 %v136, %v209
    %v211 = vpop.f32.mrb[0].mxu0
    %212 = vdwg.mxu0
    %v213 = vmax.f32 %v205, 0.0
    %v214 = vmax.f32 %v210, 0.0
    %v215 = vld [vmem:[#allocation7] sm:$0xff]
    %v216 = vld [vmem:[#allocation7 + $0x8] sm:$0xff]
    %v217 = vld [vmem:[#allocation7 + $0x10] sm:$0xff]
    %v218 = vld [vmem:[#allocation7 + $0x18] sm:$0xff]
    %v219 = vld [vmem:[#allocation7 + $0x20] sm:$0xff]
    %v220 = vld [vmem:[#allocation7 + $0x28] sm:$0xff]
    %v221 = vld [vmem:[#allocation7 + $0x30] sm:$0xff]
    %v222 = vld [vmem:[#allocation7 + $0x38] sm:$0xff]
    %v223 = vld [vmem:[#allocation7 + $0x40] sm:$0xff]
    %v224 = vld [vmem:[#allocation7 + $0x48] sm:$0xff]
    %v225 = vld [vmem:[#allocation7 + $0x50] sm:$0xff]
    %v226 = vld [vmem:[#allocation7 + $0x58] sm:$0xff]
    %v227 = vld [vmem:[#allocation7 + $0x60] sm:$0xff]
    %v228 = vld [vmem:[#allocation7 + $0x68] sm:$0xff]
    %v229 = vld [vmem:[#allocation7 + $0x70] sm:$0xff]
    %v230 = vld [vmem:[#allocation7 + $0x78] sm:$0xff]
    %v231 = vld [vmem:[%s6] sm:$0x1]
    %v233 = vlaneseq
    %v234 = vshrl.u32 %v233, 7
    %v235 = vsub.s32 0, %v234
    %v236 = vrot.slane %v231, %v235
    %238 = vmatprep.subr.mxu0 0.0
    %239 = vmatpush1.msra.mxu0 %v215
    %240 = vmatprep.subr.mxu0 0.0
    %241 = vmatpush1.msra.mxu0 %v216
    %242 = vmatprep.subr.mxu0 0.0
    %243 = vmatpush1.msra.mxu0 %v217
    %244 = vmatprep.subr.mxu0 0.0
    %245 = vmatpush1.msra.mxu0 %v218
    %246 = vmatprep.subr.mxu0 0.0
    %247 = vmatpush1.msra.mxu0 %v219
    %248 = vmatprep.subr.mxu0 0.0
    %249 = vmatpush1.msra.mxu0 %v220
    %250 = vmatprep.subr.mxu0 0.0
    %251 = vmatpush1.msra.mxu0 %v221
    %252 = vmatprep.subr.mxu0 0.0
    %253 = vmatpush1.msra.mxu0 %v222
    %254 = vmatprep.subr.mxu0 0.0
    %255 = vmatpush1.msra.mxu0 %v223
    %256 = vmatprep.subr.mxu0 0.0
    %257 = vmatpush1.msra.mxu0 %v224
    %258 = vmatprep.subr.mxu0 0.0
    %259 = vmatpush1.msra.mxu0 %v225
    %260 = vmatprep.subr.mxu0 0.0
    %261 = vmatpush1.msra.mxu0 %v226
    %262 = vmatprep.subr.mxu0 0.0
    %263 = vmatpush1.msra.mxu0 %v227
    %264 = vmatprep.subr.mxu0 0.0
    %265 = vmatpush1.msra.mxu0 %v228
    %266 = vmatprep.subr.mxu0 0.0
    %267 = vmatpush1.msra.mxu0 %v229
    %268 = vmatprep.subr.mxu0 0.0
    %269 = vmatpush1.msra.mxu0 %v230
    %270 = vmatprep.subr.mxu0 0.0
    %271 = vmatpush1.msra.mxu0 0.0
    %272 = vmatprep.subr.mxu0 0.0
    %273 = vmatpush1.msra.mxu0 0.0
    %274 = vmatprep.subr.mxu0 0.0
    %275 = vmatpush1.msra.mxu0 0.0
    %276 = vmatprep.subr.mxu0 0.0
    %277 = vmatpush1.msra.mxu0 0.0
    %278 = vmatprep.subr.mxu0 0.0
    %279 = vmatpush1.msra.mxu0 0.0
    %280 = vmatprep.subr.mxu0 0.0
    %281 = vmatpush1.msra.mxu0 0.0
    %282 = vmatprep.subr.mxu0 0.0
    %283 = vmatpush1.msra.mxu0 0.0
    %284 = vmatprep.subr.mxu0 0.0
    %285 = vmatpush1.msra.mxu0 0.0
    %286 = vmatprep.subr.mxu0 0.0
    %287 = vmatpush1.msra.mxu0 0.0
    %288 = vmatprep.subr.mxu0 0.0
    %289 = vmatpush1.msra.mxu0 0.0
    %290 = vmatprep.subr.mxu0 0.0
    %291 = vmatpush1.msra.mxu0 0.0
    %292 = vmatprep.subr.mxu0 0.0
    %293 = vmatpush1.msra.mxu0 0.0
    %294 = vmatprep.subr.mxu0 0.0
    %295 = vmatpush1.msra.mxu0 0.0
    %296 = vmatprep.subr.mxu0 0.0
    %297 = vmatpush1.msra.mxu0 0.0
    %298 = vmatprep.subr.mxu0 0.0
    %299 = vmatpush1.msra.mxu0 0.0
    %300 = vmatprep.subr.mxu0 0.0
    %301 = vmatpush1.msra.mxu0 0.0
    %302 = vmatprep.mubr.f32.mxu0 0.0
    %303 = vmatmul.mubr.f32.gmra.mrb[0].mxu0 %v213
    %v304 = vpop.f32.mrb[0].mxu0
    %v305 = vadd.f32 %v236, %v304
    %v306 = vpop.f32.mrb[0].mxu0
    %307 = vmatprep.mubr.f32.mxu0 0.0
    %308 = vmatmul.mubr.f32.gmra.mrb[0].mxu0 %v214
    %v309 = vpop.f32.mrb[0].mxu0
    %v310 = vadd.f32 %v236, %v309
    %v311 = vpop.f32.mrb[0].mxu0
    %312 = vdwg.mxu0
    %313 = vst [vmem:[#allocation8] sm:$0xff] %v305
    %314 = vst [vmem:[#allocation8 + $0x8] sm:$0xff] %v310
    // Predicated region
    $region42: #{tpu_custom_call.1} parent=1 // pred_check
      _
    $region43: #{tpu_custom_call.1} parent=1 // pred_check_branch
      %316 = sbr.rel (0) target = $region45
    $region44: #{tpu_custom_call.1} parent=1 // pred_region
      %s318 = ssub.s32 256, 256
      %319 = vsyncadd [#allocation4], %s318
      %s320 = sshll.u32 [#allocation8], 4
      %s321 = int_to_ptr.vmem [resolvable:$true] %s320
      %326 = dma.vmem_to_hbm [thread:$0]  %s321, 256, %s7, [#allocation4], 128, 128, 8
    $region45: #{tpu_custom_call.1} parent=1 // pred_fallthru
      _
    // Predicated region
    $region46: #{tpu_custom_call.1} parent=1 // pred_check
      _
    $region47: #{tpu_custom_call.1} parent=1 // pred_check_branch
      %328 = sbr.rel (0) target = $region49
    $region48: #{tpu_custom_call.1} parent=1 // pred_region
      %329 = dma.done [#allocation4], 256
    $region49: #{tpu_custom_call.1} parent=1 // pred_fallthru
      _
    %330 = vsyncpa [#allocation3], 1
    %331 = vsyncpa [#allocation6], 1
    %332 = vsyncpa [#allocation4], 1

</llo_original>
